<compile_context>
chip_gen: v5e
topology: v5e:2x2
jax: 0.10.0
libtpu: 0.0.40
codegen_flags: <defaults>
</compile_context>

<pallas_src>
import numpy as np
import jax
import jax.numpy as jnp
from jax.experimental import pallas as pl
from jax.experimental.pallas import tpu as pltpu


# --------------------------- VMEM budgeting ---------------------------------

def _vmem_budgets():
    """Generation-aware (vmem_limit_bytes, per-step block budget)."""
    cap = 64 * 1024 * 1024                      # conservative fallback (v7x per-TC)
    try:
        cap = int(getattr(pltpu.get_tpu_info(), "vmem_capacity_bytes", cap))
    except Exception:
        pass
    vmem_limit = (cap * 3) // 4                 # above scoped defaults, below physical
    block_budget = (cap * 11) // 20             # ~0.55*cap for blocks + temporaries
    return vmem_limit, block_budget


def _pick_plane_batch(nc, h, w, itemsize, block_budget):
    """Largest plane batch tc (divisor of nc) whose VMEM footprint fits the budget.

    Footprint model (per plane element): 2x input block (double-buffered) +
    2x output block (double-buffered) + f32 intermediate (+ f32 working copy
    of x when the input is 16-bit) + margin.
    """
    const = 4 * (h * h + w * w) * 4             # in-kernel A/B^T + build temporaries (f32)
    budget = block_budget - const
    f32_copy = 0 if itemsize == 4 else 4
    per_plane = h * w * (4 * itemsize + 8 + f32_copy)

    sub = 16 if itemsize == 2 else 8            # native sublane tile for the dtype
    max_tc = 64                                 # bound per-step unroll / compile time
    divisors = [d for d in range(1, nc + 1)
                if nc % d == 0 and (d <= max_tc or d == nc)]
    # out/in block (tc*H, W): tc*H must be a multiple of the sublane tile
    # unless the block covers the full array.
    valid = [d for d in divisors if (d * h) % sub == 0 or d == nc]
    fitting = [d for d in valid if d * per_plane <= budget]
    if not fitting:
        # TODO(synk): H-strip (row-band) fallback via scalar-prefetched band
        # starts for planes too large for VMEM even at tc=1 (e.g. 4k x 4k f32
        # on v7x); currently degrades to the smallest valid tc.
        fitting = [valid[0]]
    even = [d for d in fitting if (nc // d) % 2 == 0]   # balanced split for v7x megacore
    if even:
        return max(even)
    multi = [d for d in fitting if nc // d >= 2]
    return max(multi) if multi else max(fitting)


# ------------------------ in-kernel interpolation ---------------------------

def _interp_matrix(n, crop, off, out_axis):
    """(n, n) f32 two-tap bilinear interpolation matrix built in-kernel.

    out_axis=0: rows index the output pixel   -> row matrix A.
    out_axis=1: columns index the output pixel -> transposed column matrix B^T.
    `crop`/`off` are traced int32 scalars (from SMEM); the crop offset is
    folded in.  Matches torch bilinear resize, align_corners=False.
    """
    cropf = crop.astype(jnp.float32)
    out_idx = jax.lax.broadcasted_iota(jnp.int32, (n, n), out_axis).astype(jnp.float32)
    in_idx = jax.lax.broadcasted_iota(jnp.int32, (n, n), 1 - out_axis)
    src = jnp.clip((out_idx + 0.5) * (cropf / n) - 0.5, 0.0, cropf - 1.0)
    i0 = jnp.floor(src)
    w1 = src - i0
    i0i = i0.astype(jnp.int32)
    i1i = jnp.minimum(i0i + 1, crop - 1)
    tap0 = jnp.where(in_idx == i0i + off, 1.0 - w1, 0.0)
    tap1 = jnp.where(in_idx == i1i + off, w1, 0.0)
    return tap0 + tap1


# ----------------------------- Pallas wrapper -------------------------------

def _apply_bilinear_resize(x_nchw, dims_i32):
    n, c, h, w = x_nchw.shape
    nc = n * c
    vmem_limit, block_budget = _vmem_budgets()
    itemsize = jnp.dtype(x_nchw.dtype).itemsize
    tc = _pick_plane_batch(nc, h, w, itemsize, block_budget)
    x2d = x_nchw.reshape(nc * h, w)             # pure reshape, no data movement

    def kernel(dims_ref, x_ref, o_ref):
        # dims_ref: SMEM (4,) int32 = [top, left, crop_h, crop_w]
        top, left = dims_ref[0], dims_ref[1]
        crop_h, crop_w = dims_ref[2], dims_ref[3]
        # Interpolation matrices built from 4 SMEM scalars: no host-side dense
        # numpy build, no HxH / WxW host->device transfer, no constant DMAs.
        a = _interp_matrix(h, crop_h, top, out_axis=0)     # (H, H)
        bt = _interp_matrix(w, crop_w, left, out_axis=1)   # (W, W) == B^T

        x = x_ref[...].astype(jnp.float32)                 # (tc*H, W); no-op for f32
        # Column interpolation: ONE M-dense (tc*H, W) @ (W, W) MXU matmul.
        y = jnp.dot(x, bt, preferred_element_type=jnp.float32)
        # Row interpolation per plane; each (H, W) result streams straight
        # into its output slice (no concatenate, no re-cast, no scratch slab).
        for p in range(tc):
            o_ref[p * h:(p + 1) * h, :] = jnp.dot(
                a, y[p * h:(p + 1) * h, :],
                preferred_element_type=jnp.float32).astype(o_ref.dtype)

    out2d = pl.pallas_call(
        kernel,
        out_shape=jax.ShapeDtypeStruct((nc * h, w), x_nchw.dtype),
        grid_spec=pltpu.PrefetchScalarGridSpec(
            num_scalar_prefetch=1,
            grid=(nc // tc,),
            in_specs=[pl.BlockSpec((tc * h, w), lambda i, dims: (i, 0))],
            # NOTE: W % 128 != 0 makes this store lane-masked; see header note.
            out_specs=pl.BlockSpec((tc * h, w), lambda i, dims: (i, 0)),
        ),
        compiler_params=pltpu.CompilerParams(
            # Independent plane batches; the picker prefers an even step count
            # so v7x's two TensorCores get balanced work.
            # TODO(synk): evaluate pltpu.CORE_PARALLEL on v7x explicitly.
            dimension_semantics=("parallel",),
            vmem_limit_bytes=vmem_limit),
    )(dims_i32, x2d)
    return out2d.reshape(n, c, h, w)


# ------------------- host reference / nearest-mask helpers ------------------

def _bilinear_matrix(out_size, crop_size, offset, full_size):
    """Reference-only numpy build of the interpolation matrix (crop folded in)."""
    A = np.zeros((out_size, full_size), dtype=np.float32)
    scale = crop_size / out_size
    src = (np.arange(out_size) + 0.5) * scale - 0.5
    src = np.clip(src, 0.0, crop_size - 1.0)
    i0 = np.floor(src).astype(np.int64)
    i1 = np.minimum(i0 + 1, crop_size - 1)
    w1 = (src - i0).astype(np.float32)
    rows = np.arange(out_size)
    np.add.at(A, (rows, offset + i0), 1.0 - w1)
    np.add.at(A, (rows, offset + i1), w1)
    return A


def _nearest_indices(out_size, crop_size, offset):
    """Legacy torch 'nearest': src = floor(dst * in/out), crop offset folded in."""
    scale = crop_size / out_size
    idx = np.minimum(np.floor(np.arange(out_size) * scale),
                     crop_size - 1).astype(np.int32)
    return idx + offset


# ------------------------------- module -------------------------------------

class CropResize:
    def __init__(self, min_ratio=0.5, max_ratio=1.0, seed=0):
        self.min_ratio = min_ratio
        self.max_ratio = max_ratio
        self._rng = np.random.default_rng(seed)   # host RNG, fresh draw per call

    def get_random_ratio(self):
        if self.min_ratio is None or self.max_ratio is None:
            raise ValueError("min_ratio and max_ratio must be provided")
        h_ratio = float(self._rng.uniform(self.min_ratio, self.max_ratio))
        w_ratio = float(self._rng.uniform(self.min_ratio, self.max_ratio))
        return h_ratio, w_ratio

    def __call__(self, image, mask):
        _, _, h, w = image.shape
        h_ratio, w_ratio = self.get_random_ratio()
        crop_h, crop_w = int(h * h_ratio), int(w * w_ratio)
        top = int(self._rng.integers(0, h - crop_h + 1))
        left = int(self._rng.integers(0, w - crop_w + 1))
        self._last_dims = (top, left, crop_h, crop_w)

        # image: crop + bilinear resize on the MXU; only 4 scalars go to device.
        dims = jnp.asarray([top, left, crop_h, crop_w], dtype=jnp.int32)
        image_out = _apply_bilinear_resize(image, dims)

        # mask: NEAREST crop+resize is a pure static gather with host-built
        # indices (per prior perf review) -- exact, keeps the mask binary.
        row_idx = _nearest_indices(h, crop_h, top)
        col_idx = _nearest_indices(w, crop_w, left)
        mask_out = mask[:, :, row_idx, :][:, :, :, col_idx]
        return image_out, mask_out


# ------------------------------- main ----------------------------------------

if __name__ == "__main__":
    key = jax.random.PRNGKey(0)
    k_img, k_msk = jax.random.split(key)
    image = jax.random.normal(k_img, (2, 4, 16, 16), dtype=jnp.float32)
    mask = (jax.random.uniform(k_msk, (2, 1, 16, 16)) > 0.5).astype(jnp.float32)

    layer = CropResize(min_ratio=0.5, max_ratio=1.0, seed=0)
    img_out, msk_out = layer(image, mask)
    jax.block_until_ready((img_out, msk_out))

    assert img_out.shape == image.shape and img_out.dtype == image.dtype
    assert msk_out.shape == mask.shape and msk_out.dtype == mask.dtype
    # nearest-resized mask must stay binary
    assert bool(jnp.all((msk_out == 0.0) | (msk_out == 1.0)))

    # numpy f32 reference for the bilinear image path
    top, left, crop_h, crop_w = layer._last_dims
    A_np = _bilinear_matrix(image.shape[2], crop_h, top, image.shape[2])
    Bt_np = _bilinear_matrix(image.shape[3], crop_w, left, image.shape[3]).T
    ref = np.einsum("hk,nckw,wv->nchv", A_np,
                    np.asarray(image, dtype=np.float32), Bt_np)
    err = float(np.max(np.abs(np.asarray(img_out, dtype=np.float32) - ref)))
    assert err < 0.1, f"max abs err vs reference: {err}"

    # nearest mask reference (exact)
    row_idx = _nearest_indices(image.shape[2], crop_h, top)
    col_idx = _nearest_indices(image.shape[3], crop_w, left)
    msk_ref = np.asarray(mask)[:, :, row_idx, :][:, :, :, col_idx]
    assert np.array_equal(np.asarray(msk_out), msk_ref)

    print("KERNEL_OK")
</pallas_src>

<mosaic_0001>
module attributes {stable_mosaic.version = 11 : i64} {
  func.func @kernel(%arg0: i32, %arg1: memref<4xi32, #tpu.memory_space<smem>>, %arg2: memref<64x16xf32, #tpu.memory_space<vmem>>, %arg3: memref<64x16xf32, #tpu.memory_space<vmem>>) attributes {dimension_semantics = [#tpu.dimension_semantics<parallel>], iteration_bounds = array<i64: 2>, scalar_prefetch = 1 : i64, scratch_operands = 0 : i64, tpu.core_type = #tpu.core_type<tc>, window_params = [{transform_indices = @transform_0, window_bounds = array<i64: 64, 16>}, {transform_indices = @transform_1, window_bounds = array<i64: 64, 16>}]} {
    %c0 = arith.constant 0 : index
    %0 = memref.load %arg1[%c0] : memref<4xi32, #tpu.memory_space<smem>>
    %c1 = arith.constant 1 : index
    %1 = memref.load %arg1[%c1] : memref<4xi32, #tpu.memory_space<smem>>
    %c2 = arith.constant 2 : index
    %2 = memref.load %arg1[%c2] : memref<4xi32, #tpu.memory_space<smem>>
    %c3 = arith.constant 3 : index
    %3 = memref.load %arg1[%c3] : memref<4xi32, #tpu.memory_space<smem>>
    %4 = arith.sitofp %2 : i32 to f32
    %5 = tpu.iota {dimensions = array<i32: 0>} : vector<16x16xi32>
    %6 = arith.sitofp %5 : vector<16x16xi32> to vector<16x16xf32>
    %7 = tpu.iota {dimensions = array<i32: 1>} : vector<16x16xi32>
    %cst = arith.constant 5.000000e-01 : f32
    %8 = vector.broadcast %cst : f32 to vector<16x16xf32>
    %9 = arith.addf %6, %8 : vector<16x16xf32>
    %cst_0 = arith.constant 1.600000e+01 : f32
    %10 = arith.divf %4, %cst_0 : f32
    %11 = vector.broadcast %10 : f32 to vector<16x16xf32>
    %12 = arith.mulf %9, %11 : vector<16x16xf32>
    %cst_1 = arith.constant 5.000000e-01 : f32
    %13 = vector.broadcast %cst_1 : f32 to vector<16x16xf32>
    %14 = arith.subf %12, %13 : vector<16x16xf32>
    %cst_2 = arith.constant 1.000000e+00 : f32
    %15 = arith.subf %4, %cst_2 : f32
    %cst_3 = arith.constant 0.000000e+00 : f32
    %16 = vector.broadcast %cst_3 : f32 to vector<16x16xf32>
    %17 = arith.maximumf %16, %14 : vector<16x16xf32>
    %18 = vector.broadcast %15 : f32 to vector<16x16xf32>
    %19 = arith.minimumf %18, %17 : vector<16x16xf32>
    %20 = math.floor %19 : vector<16x16xf32>
    %21 = arith.subf %19, %20 : vector<16x16xf32>
    %22 = arith.fptosi %20 : vector<16x16xf32> to vector<16x16xi32>
    %c1_i32 = arith.constant 1 : i32
    %23 = vector.broadcast %c1_i32 : i32 to vector<16x16xi32>
    %24 = arith.addi %22, %23 : vector<16x16xi32>
    %c1_i32_4 = arith.constant 1 : i32
    %25 = arith.subi %2, %c1_i32_4 : i32
    %26 = vector.broadcast %25 : i32 to vector<16x16xi32>
    %27 = arith.minsi %24, %26 : vector<16x16xi32>
    %28 = vector.broadcast %0 : i32 to vector<16x16xi32>
    %29 = arith.addi %22, %28 : vector<16x16xi32>
    %30 = arith.cmpi eq, %7, %29 : vector<16x16xi32>
    %cst_5 = arith.constant 1.000000e+00 : f32
    %31 = vector.broadcast %cst_5 : f32 to vector<16x16xf32>
    %32 = arith.subf %31, %21 : vector<16x16xf32>
    %cst_6 = arith.constant 0.000000e+00 : f32
    %33 = vector.broadcast %cst_6 : f32 to vector<16x16xf32>
    %34 = arith.select %30, %32, %33 : vector<16x16xi1>, vector<16x16xf32>
    %35 = vector.broadcast %0 : i32 to vector<16x16xi32>
    %36 = arith.addi %27, %35 : vector<16x16xi32>
    %37 = arith.cmpi eq, %7, %36 : vector<16x16xi32>
    %cst_7 = arith.constant 0.000000e+00 : f32
    %38 = vector.broadcast %cst_7 : f32 to vector<16x16xf32>
    %39 = arith.select %37, %21, %38 : vector<16x16xi1>, vector<16x16xf32>
    %40 = arith.addf %34, %39 : vector<16x16xf32>
    %41 = arith.sitofp %3 : i32 to f32
    %42 = tpu.iota {dimensions = array<i32: 1>} : vector<16x16xi32>
    %43 = arith.sitofp %42 : vector<16x16xi32> to vector<16x16xf32>
    %44 = tpu.iota {dimensions = array<i32: 0>} : vector<16x16xi32>
    %cst_8 = arith.constant 5.000000e-01 : f32
    %45 = vector.broadcast %cst_8 : f32 to vector<16x16xf32>
    %46 = arith.addf %43, %45 : vector<16x16xf32>
    %cst_9 = arith.constant 1.600000e+01 : f32
    %47 = arith.divf %41, %cst_9 : f32
    %48 = vector.broadcast %47 : f32 to vector<16x16xf32>
    %49 = arith.mulf %46, %48 : vector<16x16xf32>
    %cst_10 = arith.constant 5.000000e-01 : f32
    %50 = vector.broadcast %cst_10 : f32 to vector<16x16xf32>
    %51 = arith.subf %49, %50 : vector<16x16xf32>
    %cst_11 = arith.constant 1.000000e+00 : f32
    %52 = arith.subf %41, %cst_11 : f32
    %cst_12 = arith.constant 0.000000e+00 : f32
    %53 = vector.broadcast %cst_12 : f32 to vector<16x16xf32>
    %54 = arith.maximumf %53, %51 : vector<16x16xf32>
    %55 = vector.broadcast %52 : f32 to vector<16x16xf32>
    %56 = arith.minimumf %55, %54 : vector<16x16xf32>
    %57 = math.floor %56 : vector<16x16xf32>
    %58 = arith.subf %56, %57 : vector<16x16xf32>
    %59 = arith.fptosi %57 : vector<16x16xf32> to vector<16x16xi32>
    %c1_i32_13 = arith.constant 1 : i32
    %60 = vector.broadcast %c1_i32_13 : i32 to vector<16x16xi32>
    %61 = arith.addi %59, %60 : vector<16x16xi32>
    %c1_i32_14 = arith.constant 1 : i32
    %62 = arith.subi %3, %c1_i32_14 : i32
    %63 = vector.broadcast %62 : i32 to vector<16x16xi32>
    %64 = arith.minsi %61, %63 : vector<16x16xi32>
    %65 = vector.broadcast %1 : i32 to vector<16x16xi32>
    %66 = arith.addi %59, %65 : vector<16x16xi32>
    %67 = arith.cmpi eq, %44, %66 : vector<16x16xi32>
    %cst_15 = arith.constant 1.000000e+00 : f32
    %68 = vector.broadcast %cst_15 : f32 to vector<16x16xf32>
    %69 = arith.subf %68, %58 : vector<16x16xf32>
    %cst_16 = arith.constant 0.000000e+00 : f32
    %70 = vector.broadcast %cst_16 : f32 to vector<16x16xf32>
    %71 = arith.select %67, %69, %70 : vector<16x16xi1>, vector<16x16xf32>
    %72 = vector.broadcast %1 : i32 to vector<16x16xi32>
    %73 = arith.addi %64, %72 : vector<16x16xi32>
    %74 = arith.cmpi eq, %44, %73 : vector<16x16xi32>
    %cst_17 = arith.constant 0.000000e+00 : f32
    %75 = vector.broadcast %cst_17 : f32 to vector<16x16xf32>
    %76 = arith.select %74, %58, %75 : vector<16x16xi1>, vector<16x16xf32>
    %77 = arith.addf %71, %76 : vector<16x16xf32>
    %c0_18 = arith.constant 0 : index
    %c0_19 = arith.constant 0 : index
    %78 = vector.load %arg2[%c0_18, %c0_19] : memref<64x16xf32, #tpu.memory_space<vmem>>, vector<64x16xf32>
    %cst_20 = arith.constant dense<0.000000e+00> : vector<64x16xf32>
    %79 = tpu.matmul %78, %77, %cst_20 {dimension_numbers = #tpu.dot_dimension_numbers<[1], [0], [0], [1], [0, 0, 1, 1], [], []>} : vector<64x16xf32>, vector<16x16xf32>, vector<64x16xf32> -> vector<64x16xf32>
    %80 = vector.extract_strided_slice %79 {offsets = [0, 0], sizes = [16, 16], strides = [1, 1]} : vector<64x16xf32> to vector<16x16xf32>
    %cst_21 = arith.constant dense<0.000000e+00> : vector<16x16xf32>
    %81 = tpu.matmul %40, %80, %cst_21 {dimension_numbers = #tpu.dot_dimension_numbers<[1], [0], [0], [1], [0, 0, 1, 1], [], []>} : vector<16x16xf32>, vector<16x16xf32>, vector<16x16xf32> -> vector<16x16xf32>
    %c0_22 = arith.constant 0 : index
    %c0_23 = arith.constant 0 : index
    %82 = vector.load %arg3[%c0_22, %c0_23] : memref<64x16xf32, #tpu.memory_space<vmem>>, vector<16x16xf32>
    tpu.vector_store %arg3[%c0_22, %c0_23], %81 {strides = array<i32>} : memref<64x16xf32, #tpu.memory_space<vmem>>, vector<16x16xf32>,
    %83 = vector.extract_strided_slice %79 {offsets = [16, 0], sizes = [16, 16], strides = [1, 1]} : vector<64x16xf32> to vector<16x16xf32>
    %cst_24 = arith.constant dense<0.000000e+00> : vector<16x16xf32>
    %84 = tpu.matmul %40, %83, %cst_24 {dimension_numbers = #tpu.dot_dimension_numbers<[1], [0], [0], [1], [0, 0, 1, 1], [], []>} : vector<16x16xf32>, vector<16x16xf32>, vector<16x16xf32> -> vector<16x16xf32>
    %c16 = arith.constant 16 : index
    %c0_25 = arith.constant 0 : index
    %85 = vector.load %arg3[%c16, %c0_25] : memref<64x16xf32, #tpu.memory_space<vmem>>, vector<16x16xf32>
    tpu.vector_store %arg3[%c16, %c0_25], %84 {strides = array<i32>} : memref<64x16xf32, #tpu.memory_space<vmem>>, vector<16x16xf32>,
    %86 = vector.extract_strided_slice %79 {offsets = [32, 0], sizes = [16, 16], strides = [1, 1]} : vector<64x16xf32> to vector<16x16xf32>
    %cst_26 = arith.constant dense<0.000000e+00> : vector<16x16xf32>
    %87 = tpu.matmul %40, %86, %cst_26 {dimension_numbers = #tpu.dot_dimension_numbers<[1], [0], [0], [1], [0, 0, 1, 1], [], []>} : vector<16x16xf32>, vector<16x16xf32>, vector<16x16xf32> -> vector<16x16xf32>
    %c32 = arith.constant 32 : index
    %c0_27 = arith.constant 0 : index
    %88 = vector.load %arg3[%c32, %c0_27] : memref<64x16xf32, #tpu.memory_space<vmem>>, vector<16x16xf32>
    tpu.vector_store %arg3[%c32, %c0_27], %87 {strides = array<i32>} : memref<64x16xf32, #tpu.memory_space<vmem>>, vector<16x16xf32>,
    %89 = vector.extract_strided_slice %79 {offsets = [48, 0], sizes = [16, 16], strides = [1, 1]} : vector<64x16xf32> to vector<16x16xf32>
    %cst_28 = arith.constant dense<0.000000e+00> : vector<16x16xf32>
    %90 = tpu.matmul %40, %89, %cst_28 {dimension_numbers = #tpu.dot_dimension_numbers<[1], [0], [0], [1], [0, 0, 1, 1], [], []>} : vector<16x16xf32>, vector<16x16xf32>, vector<16x16xf32> -> vector<16x16xf32>
    %c48 = arith.constant 48 : index
    %c0_29 = arith.constant 0 : index
    %91 = vector.load %arg3[%c48, %c0_29] : memref<64x16xf32, #tpu.memory_space<vmem>>, vector<16x16xf32>
    tpu.vector_store %arg3[%c48, %c0_29], %90 {strides = array<i32>} : memref<64x16xf32, #tpu.memory_space<vmem>>, vector<16x16xf32>,
    return
  }
  func.func @transform_0(%arg0: i32, %arg1: memref<4xi32, #tpu.memory_space<smem>>) -> (i32, i32) {
    %c0_i32 = arith.constant 0 : i32
    %c0_i32_0 = arith.constant 0 : i32
    return %arg0, %c0_i32 : i32, i32
  }
  func.func @transform_1(%arg0: i32, %arg1: memref<4xi32, #tpu.memory_space<smem>>) -> (i32, i32) {
    %c0_i32 = arith.constant 0 : i32
    %c0_i32_0 = arith.constant 0 : i32
    return %arg0, %c0_i32 : i32, i32
  }
}

</mosaic_0001>

<llo_original>
// kernel: tpu_custom_call.1
$region0: #{tpu_custom_call.1}
  #allocation0 [shape = 'u32[]', space=smem, size = 0x4, offset = 0x4, fixed_abs, tag = 'smem constant byte address 0x4 - core index']
  #allocation1 [shape = 'u32[72,128]{1,0:T(1,128)}', space=vmem, size = 0x9000, scoped, tag = 'internal scratch']
  #allocation2 [shape = 's32[1]{0}', space=sflag, size = 0x4, scoped, tag = 'scoped memory for tpu_custom_call.1']
  #allocation3 [shape = 'u8[512]{0}', space=smem, size = 0x200, scoped, tag = 'prefetched SMEM operand 0']
  %s0 = inlined_call_operand.vmem [shape: s32[4], index: 0, kind: input, shape index: {}]
  %s1 = inlined_call_operand.vmem [shape: f32[128,16], index: 1, kind: input, shape index: {}]
  %s2 = inlined_call_operand.vmem [shape: f32[128,16], index: 2, kind: output, shape index: {}]
  %s3 = sld [smem:[#allocation0]]
  $region37: #{tpu_custom_call.1} parent=0
    _
  %s5 = ssub.s32 1, %s3
  %s6 = scalar_select 0, %s5, %s3
  %s8 = sshll.u32 %s0, 4
  %s9 = int_to_ptr.vmem [resolvable:$true] %s8
  %11 = dma.vmem_to_smem %s9, 16, [#allocation3], [#allocation2]
  %13 = dma.done [#allocation2], 16
  %14 = sfence
  loop: start=0, step=1, limit=4
  $region2: #{tpu_custom_call.1} parent=0 // loop_pre_header
    _
  $region3: #{tpu_custom_call.1} parent=0 // loop_header
    %s16 = sphi 0, %s20
    %p17 = scmp.ge.s32.totalorder %s16, 4
    %s26 = sphi 0, %s28
    %s29 = sphi 0, %s26
    %s30 = sphi 0, %s29
    %s46 = sphi 0, %s30
    %s52 = sphi 0, %s54
    %s55 = sphi 0, %s52
    %s56 = sphi 0, %s55
    %s72 = sphi 0, %s56
  $region4: #{tpu_custom_call.1} parent=0 // loop_header_branch
    %19 = sbr.rel (%p17) target = $region8
  $region5: #{tpu_custom_call.1} parent=0 // loop_body
    %s21 = ssub.s32 %s16, 1
    %s22 = ssub.s32 %s16, 2
    %s23 = sadd.s32 %s16, 1
    %s24 = ssub.s32 %s16, %s23
    %p25 = scmp.eq.s32.totalorder %s24, 0
    %s27 = sadd.s32 %s26, 1
    %s28 = scalar_select %p25, %s26, %s27
    %p31 = pneg %p25
    %p32 = scmp.eq.s32.totalorder %s16, 1
    %p33 = por %p31, %p32
    %p34 = scmp.ne.s32.totalorder %s26, %s29
    %p35 = scmp.eq.s32.totalorder %s16, 0
    %p36 = por %p34, %p35
    %p37 = scmp.ne.s32.totalorder %s26, %s29
    %p38 = scmp.eq.s32.totalorder %s21, 1
    %p39 = por %p37, %p38
    %p40 = scmp.ne.s32.totalorder %s29, %s30
    %p41 = scmp.eq.s32.totalorder %s21, 0
    %p42 = por %p40, %p41
    %p43 = scmp.ne.s32.totalorder %s29, %s30
    %p44 = scmp.eq.s32.totalorder %s22, 1
    %p45 = por %p43, %p44
    %p47 = scmp.ne.s32.totalorder %s30, %s46
    %p48 = scmp.eq.s32.totalorder %s22, 0
    %p49 = por %p47, %p48
    %s50 = ssub.s32 %s16, %s23
    %p51 = scmp.eq.s32.totalorder %s50, 0
    %s53 = sadd.s32 %s52, 1
    %s54 = scalar_select %p51, %s52, %s53
    %p57 = pneg %p51
    %p58 = scmp.eq.s32.totalorder %s16, 1
    %p59 = por %p57, %p58
    %p60 = scmp.ne.s32.totalorder %s52, %s55
    %p61 = scmp.eq.s32.totalorder %s16, 0
    %p62 = por %p60, %p61
    %p63 = scmp.ne.s32.totalorder %s52, %s55
    %p64 = scmp.eq.s32.totalorder %s21, 1
    %p65 = por %p63, %p64
    %p66 = scmp.ne.s32.totalorder %s55, %s56
    %p67 = scmp.eq.s32.totalorder %s21, 0
    %p68 = por %p66, %p67
    %p69 = scmp.ne.s32.totalorder %s55, %s56
    %p70 = scmp.eq.s32.totalorder %s22, 1
    %p71 = por %p69, %p70
    %p73 = scmp.ne.s32.totalorder %s56, %s72
    %p74 = scmp.eq.s32.totalorder %s22, 0
    %p75 = por %p73, %p74
    %p76 = scmp.le.s32.totalorder 1, %s16
    %p77 = scmp.lt.s32.totalorder %s16, 3
    %p78 = pnand %p76, %p77
    %p79 = pneg %p78
    // Predicated region
    $region9: #{tpu_custom_call.1} parent=5 // pred_check
      _
    $region10: #{tpu_custom_call.1} parent=5 // pred_check_branch
      %81 = sbr.rel (%p78) target = $region12
    $region11: #{tpu_custom_call.1} parent=5 // pred_region
      %s82 = ssub.s32 %s16, 1
    $region12: #{tpu_custom_call.1} parent=5 // pred_fallthru
      _
    %p83 = scmp.lt.s32.totalorder %s16, 2
    // Predicated region
    $region13: #{tpu_custom_call.1} parent=5 // pred_check
      %p84 = pneg %p83
    $region14: #{tpu_custom_call.1} parent=5 // pred_check_branch
      %86 = sbr.rel (%p84) target = $region16
    $region15: #{tpu_custom_call.1} parent=5 // pred_region
      // Predicated region
      $region17: #{tpu_custom_call.1} parent=15 // pred_check
        %p87 = pneg %p36
      $region18: #{tpu_custom_call.1} parent=15 // pred_check_branch
        %89 = sbr.rel (%p87) target = $region20
      $region19: #{tpu_custom_call.1} parent=15 // pred_region
        %s90 = smul.u32 8, %s16
        %p91 = scmp.lt.s32.totalorder %s90, 15
        %s92 = scalar_select %p91, %s90, 15
        %s93 = smul.addr %s92, 8
        %s94 = scalar_lea.vmem %s1, %s93
        %s95 = smul.u32 8, %s16
      $region20: #{tpu_custom_call.1} parent=15 // pred_fallthru
        _
    $region16: #{tpu_custom_call.1} parent=5 // pred_fallthru
      _
    %p96 = scmp.le.s32.totalorder 1, %s16
    %p97 = scmp.lt.s32.totalorder %s16, 3
    %p98 = pnand %p96, %p97
    %p99 = pneg %p98
    // Predicated region
    $region21: #{tpu_custom_call.1} parent=5 // pred_check
      _
    $region22: #{tpu_custom_call.1} parent=5 // pred_check_branch
      %101 = sbr.rel (%p98) target = $region24
    $region23: #{tpu_custom_call.1} parent=5 // pred_region
      %s102 = ssub.s32 %s16, 1
      %s103 = smul.u32 8, %s21
      %p104 = scmp.lt.s32.totalorder %s103, 15
      %s105 = scalar_select %p104, %s103, 15
      %s106 = smul.addr %s105, 8
      %s107 = scalar_lea.vmem %s1, %s106
      %p108 = pneg %p42
      %p109 = pneg %p39
      %p110 = pneg %p68
      %p111 = pneg %p65
      %s112 = smul.u32 8, %s21
      %p113 = scmp.lt.s32.totalorder %s112, 15
      %s114 = scalar_select %p113, %s112, 15
      %s115 = smul.addr %s114, 8
      %s116 = scalar_lea.vmem %s2, %s115
      %s117 = smul.u32 8, %s21
      %p118 = scmp.lt.s32.totalorder %s117, 15
      %s119 = scalar_select %p118, %s117, 15
      %s120 = smul.addr %s119, 8
      %s121 = scalar_lea.vmem %s1, %s120
      %s122 = smul.u32 8, %s21
      %s123 = smul.u32 8, %s21
      %p124 = scmp.lt.s32.totalorder %s123, 15
      %s125 = scalar_select %p124, %s123, 15
      %s126 = smul.addr %s125, 8
      %s127 = scalar_lea.vmem %s2, %s126
      %s128 = smul.u32 8, %s21
      %s129 = sld [smem:[#allocation3]]
      %s130 = sld [smem:[#allocation3 + $0x1]]
      %s131 = sld [smem:[#allocation3 + $0x2]]
      %s132 = sld [smem:[#allocation3 + $0x3]]
      %s133 = scvt.s32.f32 %s131
      %v134 = vlaneseq
      %v135 = vshrl.u32 %v134, 7
      %v136 = vadd.s32 %v135, 8
      %v137 = vcvt.s32.f32 %v135
      %v138 = vcvt.s32.f32 %v136
      %v139 = vlaneseq
      %v140 = vand.u32 %v139, 127
      %v141 = vadd.f32 %v137, 0.5
      %v142 = vadd.f32 %v138, 0.5
      %v143 = vrcp.pop 16.0
      %v144 = vmul.f32 16.0, %v143
      %v145 = vsub.f32 1.0, %v144
      %v146 = vmul.f32 %v143, %v145
      %v147 = vadd.f32 %v143, %v146
      %vm148 = vweird.f32 %v143
      %v149 = vsel %vm148, %v143, %v147
      %s150 = vtos %v149
      %s151 = smul.f32 %s133, %s150
      %v152 = vstv %s151
      %v153 = vmul.f32 %v141, %v152
      %v154 = vmul.f32 %v142, %v152
      %v155 = vsub.f32 %v153, 0.5
      %v156 = vsub.f32 %v154, 0.5
      %s157 = ssub.f32 %s133, 1.0
      %v158 = vmax.f32 %v155, 0.0
      %v159 = vmax.f32 %v156, 0.0
      %v160 = vstv %s157
      %v161 = vmin.f32 %v160, %v158
      %v162 = vmin.f32 %v160, %v159
      %v163 = vfloor.f32 %v161
      %v164 = vfloor.f32 %v162
      %v165 = vsub.f32 %v161, %v163
      %v166 = vsub.f32 %v162, %v164
      %v167 = vcvt.f32.s32.to.zero.pseudo %v163
      %v168 = vcvt.f32.s32.to.zero.pseudo %v164
      %v169 = vadd.s32 %v167, 1
      %v170 = vadd.s32 %v168, 1
      %s171 = ssub.s32 %s131, 1
      %v172 = vstv %s171
      %vm173 = vcmp.lt.s32.totalorder %v169, %v172
      %v174 = vsel %vm173, %v169, %v172
      %vm175 = vcmp.lt.s32.totalorder %v170, %v172
      %v176 = vsel %vm175, %v170, %v172
      %v177 = vstv %s129
      %v178 = vadd.s32 %v167, %v177
      %v179 = vadd.s32 %v168, %v177
      %vm180 = vcmp.eq.s32.totalorder %v140, %v178
      %vm181 = vcmp.eq.s32.totalorder %v140, %v179
      %v182 = vsub.f32 1.0, %v165
      %v183 = vsub.f32 1.0, %v166
      %v184 = vsel %vm180, %v182, 0.0
      %v185 = vsel %vm181, %v183, 0.0
      %v186 = vadd.s32 %v174, %v177
      %v187 = vadd.s32 %v176, %v177
      %vm188 = vcmp.eq.s32.totalorder %v140, %v186
      %vm189 = vcmp.eq.s32.totalorder %v140, %v187
      %v190 = vsel %vm188, %v165, 0.0
      %v191 = vsel %vm189, %v166, 0.0
      %v192 = vadd.f32 %v184, %v190
      %v193 = vadd.f32 %v185, %v191
      %s194 = scvt.s32.f32 %s132
      %v195 = vcvt.s32.f32 %v140
      %v196 = vadd.f32 %v195, 0.5
      %v197 = vrcp.pop 16.0
      %v198 = vmul.f32 16.0, %v197
      %v199 = vsub.f32 1.0, %v198
      %v200 = vmul.f32 %v197, %v199
      %v201 = vadd.f32 %v197, %v200
      %vm202 = vweird.f32 %v197
      %v203 = vsel %vm202, %v197, %v201
      %s204 = vtos %v203
      %s205 = smul.f32 %s194, %s204
      %v206 = vstv %s205
      %v207 = vmul.f32 %v196, %v206
      %v208 = vsub.f32 %v207, 0.5
      %s209 = ssub.f32 %s194, 1.0
      %v210 = vmax.f32 %v208, 0.0
      %v211 = vstv %s209
      %v212 = vmin.f32 %v211, %v210
      %v213 = vfloor.f32 %v212
      %v214 = vsub.f32 %v212, %v213
      %v215 = vcvt.f32.s32.to.zero.pseudo %v213
      %v216 = vadd.s32 %v215, 1
      %s217 = ssub.s32 %s132, 1
      %v218 = vstv %s217
      %vm219 = vcmp.lt.s32.totalorder %v216, %v218
      %v220 = vsel %vm219, %v216, %v218
      %v221 = vstv %s130
      %v222 = vadd.s32 %v215, %v221
      %vm223 = vcmp.eq.s32.totalorder %v135, %v222
      %vm224 = vcmp.eq.s32.totalorder %v136, %v222
      %v225 = vsub.f32 1.0, %v214
      %v226 = vsel %vm223, %v225, 0.0
      %v227 = vsel %vm224, %v225, 0.0
      %v228 = vadd.s32 %v220, %v221
      %vm229 = vcmp.eq.s32.totalorder %v135, %v228
      %vm230 = vcmp.eq.s32.totalorder %v136, %v228
      %v231 = vsel %vm229, %v214, 0.0
      %v232 = vsel %vm230, %v214, 0.0
      %v233 = vadd.f32 %v226, %v231
      %v234 = vadd.f32 %v227, %v232
      %v235 = vld [vmem:[%s121] sm:$0xff]
      %v236 = vld [vmem:[%s121 + $0x8] sm:$0xff]
      %v237 = vld [vmem:[%s121 + $0x10] sm:$0xff]
      %v238 = vld [vmem:[%s121 + $0x18] sm:$0xff]
      %v239 = vld [vmem:[%s121 + $0x20] sm:$0xff]
      %v240 = vld [vmem:[%s121 + $0x28] sm:$0xff]
      %v241 = vld [vmem:[%s121 + $0x30] sm:$0xff]
      %v242 = vld [vmem:[%s121 + $0x38] sm:$0xff]
      %vm243 = vcmask 130048
      %v245 = vsel %vm243, %v235, 0
      %v248 = vsel %vm243, %v236, 0
      %v251 = vsel %vm243, %v237, 0
      %v254 = vsel %vm243, %v238, 0
      %v257 = vsel %vm243, %v239, 0
      %v260 = vsel %vm243, %v240, 0
      %v263 = vsel %vm243, %v241, 0
      %v266 = vsel %vm243, %v242, 0
      %268 = vmatpush.msra.mxu0 0.0
      %269 = vmatpush.msra.mxu0 0.0
      %270 = vmatpush.msra.mxu0 0.0
      %271 = vmatpush.msra.mxu0 0.0
      %272 = vmatpush.msra.mxu0 0.0
      %273 = vmatpush.msra.mxu0 0.0
      %274 = vmatpush.msra.mxu0 0.0
      %275 = vmatpush.msra.mxu0 0.0
      %276 = vmatpush.msra.mxu0 0.0
      %277 = vmatpush.msra.mxu0 0.0
      %278 = vmatpush.msra.mxu0 0.0
      %279 = vmatpush.msra.mxu0 0.0
      %280 = vmatpush.msra.mxu0 0.0
      %281 = vmatpush.msra.mxu0 0.0
      %282 = vmatpush.msra.mxu0 %v234
      %283 = vmatpush.msra.mxu0 %v233
      %284 = vmatmul.f32.gmra.mxu0 %v245
      %v285 = vpop.f32.mrf.mxu0
      %v286 = vadd.f32 0.0, %v285
      %287 = vmatmul.f32.gmra.mxu0 %v248
      %v288 = vpop.f32.mrf.mxu0
      %v289 = vadd.f32 0.0, %v288
      %290 = vmatmul.f32.gmra.mxu0 %v251
      %v291 = vpop.f32.mrf.mxu0
      %v292 = vadd.f32 0.0, %v291
      %293 = vmatmul.f32.gmra.mxu0 %v254
      %v294 = vpop.f32.mrf.mxu0
      %v295 = vadd.f32 0.0, %v294
      %296 = vmatmul.f32.gmra.mxu0 %v257
      %v297 = vpop.f32.mrf.mxu0
      %v298 = vadd.f32 0.0, %v297
      %299 = vmatmul.f32.gmra.mxu0 %v260
      %v300 = vpop.f32.mrf.mxu0
      %v301 = vadd.f32 0.0, %v300
      %302 = vmatmul.f32.gmra.mxu0 %v263
      %v303 = vpop.f32.mrf.mxu0
      %v304 = vadd.f32 0.0, %v303
      %305 = vmatmul.f32.gmra.mxu0 %v266
      %v306 = vpop.f32.mrf.mxu0
      %v307 = vadd.f32 0.0, %v306
      %308 = vdwg.mxu0
      %v310 = vsel %vm243, %v192, 0
      %v313 = vsel %vm243, %v193, 0
      %315 = vmatpush.msra.mxu0 0.0
      %316 = vmatpush.msra.mxu0 0.0
      %317 = vmatpush.msra.mxu0 0.0
      %318 = vmatpush.msra.mxu0 0.0
      %319 = vmatpush.msra.mxu0 0.0
      %320 = vmatpush.msra.mxu0 0.0
      %321 = vmatpush.msra.mxu0 0.0
      %322 = vmatpush.msra.mxu0 0.0
      %323 = vmatpush.msra.mxu0 0.0
      %324 = vmatpush.msra.mxu0 0.0
      %325 = vmatpush.msra.mxu0 0.0
      %326 = vmatpush.msra.mxu0 0.0
      %327 = vmatpush.msra.mxu0 0.0
      %328 = vmatpush.msra.mxu0 0.0
      %329 = vmatpush.msra.mxu0 %v289
      %330 = vmatpush.msra.mxu0 %v286
      %331 = vmatmul.f32.gmra.mxu0 %v310
      %v332 = vpop.f32.mrf.mxu0
      %v333 = vadd.f32 0.0, %v332
      %334 = vmatmul.f32.gmra.mxu0 %v313
      %v335 = vpop.f32.mrf.mxu0
      %v336 = vadd.f32 0.0, %v335
      %337 = vdwg.mxu0
      %338 = vst.msk [vmem:[%s127] sm:$0xff] %vm243, %v333
      %339 = vst.msk [vmem:[%s127 + $0x8] sm:$0xff] %vm243, %v336
      %340 = vmatpush.msra.mxu0 0.0
      %341 = vmatpush.msra.mxu0 0.0
      %342 = vmatpush.msra.mxu0 0.0
      %343 = vmatpush.msra.mxu0 0.0
      %344 = vmatpush.msra.mxu0 0.0
      %345 = vmatpush.msra.mxu0 0.0
      %346 = vmatpush.msra.mxu0 0.0
      %347 = vmatpush.msra.mxu0 0.0
      %348 = vmatpush.msra.mxu0 0.0
      %349 = vmatpush.msra.mxu0 0.0
      %350 = vmatpush.msra.mxu0 0.0
      %351 = vmatpush.msra.mxu0 0.0
      %352 = vmatpush.msra.mxu0 0.0
      %353 = vmatpush.msra.mxu0 0.0
      %354 = vmatpush.msra.mxu0 %v295
      %355 = vmatpush.msra.mxu0 %v292
      %356 = vmatmul.f32.gmra.mxu0 %v310
      %v357 = vpop.f32.mrf.mxu0
      %v358 = vadd.f32 0.0, %v357
      %359 = vmatmul.f32.gmra.mxu0 %v313
      %v360 = vpop.f32.mrf.mxu0
      %v361 = vadd.f32 0.0, %v360
      %362 = vdwg.mxu0
      %363 = vst.msk [vmem:[%s127 + $0x10] sm:$0xff] %vm243, %v358
      %364 = vst.msk [vmem:[%s127 + $0x18] sm:$0xff] %vm243, %v361
      %365 = vmatpush.msra.mxu0 0.0
      %366 = vmatpush.msra.mxu0 0.0
      %367 = vmatpush.msra.mxu0 0.0
      %368 = vmatpush.msra.mxu0 0.0
      %369 = vmatpush.msra.mxu0 0.0
      %370 = vmatpush.msra.mxu0 0.0
      %371 = vmatpush.msra.mxu0 0.0
      %372 = vmatpush.msra.mxu0 0.0
      %373 = vmatpush.msra.mxu0 0.0
      %374 = vmatpush.msra.mxu0 0.0
      %375 = vmatpush.msra.mxu0 0.0
      %376 = vmatpush.msra.mxu0 0.0
      %377 = vmatpush.msra.mxu0 0.0
      %378 = vmatpush.msra.mxu0 0.0
      %379 = vmatpush.msra.mxu0 %v301
      %380 = vmatpush.msra.mxu0 %v298
      %381 = vmatmul.f32.gmra.mxu0 %v310
      %v382 = vpop.f32.mrf.mxu0
      %v383 = vadd.f32 0.0, %v382
      %384 = vmatmul.f32.gmra.mxu0 %v313
      %v385 = vpop.f32.mrf.mxu0
      %v386 = vadd.f32 0.0, %v385
      %387 = vdwg.mxu0
      %388 = vst.msk [vmem:[%s127 + $0x20] sm:$0xff] %vm243, %v383
      %389 = vst.msk [vmem:[%s127 + $0x28] sm:$0xff] %vm243, %v386
      %390 = vmatpush.msra.mxu0 0.0
      %391 = vmatpush.msra.mxu0 0.0
      %392 = vmatpush.msra.mxu0 0.0
      %393 = vmatpush.msra.mxu0 0.0
      %394 = vmatpush.msra.mxu0 0.0
      %395 = vmatpush.msra.mxu0 0.0
      %396 = vmatpush.msra.mxu0 0.0
      %397 = vmatpush.msra.mxu0 0.0
      %398 = vmatpush.msra.mxu0 0.0
      %399 = vmatpush.msra.mxu0 0.0
      %400 = vmatpush.msra.mxu0 0.0
      %401 = vmatpush.msra.mxu0 0.0
      %402 = vmatpush.msra.mxu0 0.0
      %403 = vmatpush.msra.mxu0 0.0
      %404 = vmatpush.msra.mxu0 %v307
      %405 = vmatpush.msra.mxu0 %v304
      %406 = vmatmul.f32.gmra.mxu0 %v310
      %v407 = vpop.f32.mrf.mxu0
      %v408 = vadd.f32 0.0, %v407
      %409 = vmatmul.f32.gmra.mxu0 %v313
      %v410 = vpop.f32.mrf.mxu0
      %v411 = vadd.f32 0.0, %v410
      %412 = vdwg.mxu0
      %413 = vst.msk [vmem:[%s127 + $0x30] sm:$0xff] %vm243, %v408
      %414 = vst.msk [vmem:[%s127 + $0x38] sm:$0xff] %vm243, %v411
      %s415 = smul.u32 8, %s21
      %p416 = scmp.lt.s32.totalorder %s415, 15
      %s417 = scalar_select %p416, %s415, 15
      %s418 = smul.addr %s417, 8
      %s419 = scalar_lea.vmem %s2, %s418
      // Predicated region
      $region25: #{tpu_custom_call.1} parent=23 // pred_check
        %p420 = pneg %p65
      $region26: #{tpu_custom_call.1} parent=23 // pred_check_branch
        %422 = sbr.rel (%p420) target = $region28
      $region27: #{tpu_custom_call.1} parent=23 // pred_region
        %s423 = smul.u32 8, %s21
      $region28: #{tpu_custom_call.1} parent=23 // pred_fallthru
        _
    $region24: #{tpu_custom_call.1} parent=5 // pred_fallthru
      _
    %p424 = scmp.le.s32.totalorder 2, %s16
    // Predicated region
    $region29: #{tpu_custom_call.1} parent=5 // pred_check
      %p425 = pneg %p424
    $region30: #{tpu_custom_call.1} parent=5 // pred_check_branch
      %427 = sbr.rel (%p425) target = $region32
    $region31: #{tpu_custom_call.1} parent=5 // pred_region
      %s428 = ssub.s32 %s16, 2
      // Predicated region
      $region33: #{tpu_custom_call.1} parent=31 // pred_check
        %p429 = pneg %p71
      $region34: #{tpu_custom_call.1} parent=31 // pred_check_branch
        %431 = sbr.rel (%p429) target = $region36
      $region35: #{tpu_custom_call.1} parent=31 // pred_region
        %s432 = smul.u32 8, %s22
        %p433 = scmp.lt.s32.totalorder %s432, 15
        %s434 = scalar_select %p433, %s432, 15
        %s435 = smul.addr %s434, 8
        %s436 = scalar_lea.vmem %s2, %s435
      $region36: #{tpu_custom_call.1} parent=31 // pred_fallthru
        _
    $region32: #{tpu_custom_call.1} parent=5 // pred_fallthru
      _
  $region6: #{tpu_custom_call.1} parent=0 // loop_footer
    %s20 = sadd.s32 1, %s16
  $region7: #{tpu_custom_call.1} parent=0 // loop_footer_branch
    %15 = sbr.rel target = $region3
  $region8: #{tpu_custom_call.1} parent=0 // loop_exit
    _

</llo_original>
